<compile_context>
chip_gen: v6e
topology: v6e:2x2x1
jax: 0.10.0
libtpu: 0.0.40
codegen_flags: <defaults>
</compile_context>

<pallas_src>
import jax
import jax.numpy as jnp
from jax.experimental import pallas as pl
from jax.experimental.pallas import tpu as pltpu


# ---------------------------------------------------------------------------
# kernels
# ---------------------------------------------------------------------------
def _bn_stats_kernel(x_ref, sum_ref, sq_ref):
    """Accumulate per-row sum and sum-of-squares across the lane (j) grid axis.

    x_ref:   (row_tile, lane_tile)  native dtype
    sum_ref: (row_tile, 1)          f32 accumulator (output-resident over j)
    sq_ref:  (row_tile, 1)          f32 accumulator (output-resident over j)
    """
    @pl.when(pl.program_id(1) == 0)
    def _():
        sum_ref[...] = jnp.zeros_like(sum_ref)
        sq_ref[...] = jnp.zeros_like(sq_ref)

    x = x_ref[...].astype(jnp.float32)          # cast per tile; storage stays native
    sum_ref[...] += jnp.sum(x, axis=1, keepdims=True)
    sq_ref[...] += jnp.sum(x * x, axis=1, keepdims=True)


def _bn_apply_kernel(x_ref, scale_ref, shift_ref, y_ref):
    """y = x * scale + shift  (scale/shift are per-row (row_tile, 1) columns)."""
    x = x_ref[...].astype(jnp.float32)
    y = x * scale_ref[...] + shift_ref[...]
    y_ref[...] = y.astype(y_ref.dtype)


# ---------------------------------------------------------------------------
# tiling helper
# ---------------------------------------------------------------------------
def _pick_tile(total, max_tile, quantum):
    """Largest tile <= max_tile that divides `total` exactly and is a multiple
    of `quantum`; falls back to the full extent (always a legal block dim and
    never introduces padded garbage into the reduction)."""
    if total <= max_tile:
        return total
    for t in range(max_tile, quantum - 1, -1):
        if t % quantum == 0 and total % t == 0:
            return t
    return total  # TODO(synk): huge dims with no 128-aligned divisor fall back to one block


# ---------------------------------------------------------------------------
# forward
# ---------------------------------------------------------------------------
def batch_norm_forward(x_nchw, gamma, beta, running_mean, running_var,
                       eps=1e-5, momentum=0.1):
    """Training-mode BatchNorm forward.  x_nchw: (N, C, H, W).

    Returns (y, new_running_mean, new_running_var)."""
    N, C, H, W = x_nchw.shape
    HW = H * W
    NR = N * C
    M = N * HW
    itemsize = jnp.dtype(x_nchw.dtype).itemsize

    # Free reshape (collapses contiguous dims) — no transpose, no HBM copy.
    x2d = x_nchw.reshape(NR, HW)

    # Tile sizes: lane tile in the 128..2048 sweet spot; row tile sized so one
    # f32 input buffer is ~<= 2 MiB (double-buffered in+out stays far below the
    # 32 MiB scoped-VMEM budget on v5e/v6e/v7x).
    lane_tile = _pick_tile(HW, 2048, 128)
    max_rows = max(8, ((2 * 1024 * 1024) // (lane_tile * 4)) // 8 * 8)
    row_tile = _pick_tile(NR, max_rows, 8)
    grid = (NR // row_tile, HW // lane_tile)

    cparams_stats = pltpu.CompilerParams(
        dimension_semantics=("parallel", "arbitrary"),
        vmem_limit_bytes=32 * 1024 * 1024)
    cparams_apply = pltpu.CompilerParams(
        dimension_semantics=("parallel", "parallel"),
        vmem_limit_bytes=32 * 1024 * 1024)

    # ---- pass 1: per-(n, c)-row sum and sum-of-squares --------------------
    row_sum, row_sq = pl.pallas_call(
        _bn_stats_kernel,
        out_shape=(jax.ShapeDtypeStruct((NR, 1), jnp.float32),
                   jax.ShapeDtypeStruct((NR, 1), jnp.float32)),
        grid=grid,
        in_specs=[pl.BlockSpec((row_tile, lane_tile), lambda i, j: (i, j))],
        out_specs=(pl.BlockSpec((row_tile, 1), lambda i, j: (i, 0)),
                   pl.BlockSpec((row_tile, 1), lambda i, j: (i, 0))),
        compiler_params=cparams_stats,
        cost_estimate=pl.CostEstimate(
            flops=int(3 * NR * HW),
            transcendentals=0,
            bytes_accessed=int(NR * HW * itemsize + 8 * NR)),
    )(x2d)

    # ---- tiny O(C) epilogue: fold rows -> per-channel stats ---------------
    ch_sum = row_sum.reshape(N, C).sum(axis=0)          # (C,)
    ch_sq = row_sq.reshape(N, C).sum(axis=0)            # (C,)
    mean = ch_sum / M                                    # (C,)
    # Unbiased variance (torch.Tensor.var default) — used BOTH for the
    # normalization and the running_var update, exactly like the spec module.
    var = (ch_sq - M * mean * mean) / (M - 1)
    inv_std = jax.lax.rsqrt(var + eps)
    scale = gamma.astype(jnp.float32) * inv_std          # (C,)
    shift = beta.astype(jnp.float32) - mean * scale      # (C,)

    new_rm = (1.0 - momentum) * running_mean.astype(jnp.float32) + momentum * mean
    new_rv = (1.0 - momentum) * running_var.astype(jnp.float32) + momentum * var

    # Per-row (n, c) scale/shift columns for the apply pass (tiny: N*C f32).
    scale_rows = jnp.broadcast_to(scale[None, :], (N, C)).reshape(NR, 1)
    shift_rows = jnp.broadcast_to(shift[None, :], (N, C)).reshape(NR, 1)

    # ---- pass 2: streamed normalize y = x*scale + shift -------------------
    y2d = pl.pallas_call(
        _bn_apply_kernel,
        out_shape=jax.ShapeDtypeStruct((NR, HW), x_nchw.dtype),
        grid=grid,
        in_specs=[pl.BlockSpec((row_tile, lane_tile), lambda i, j: (i, j)),
                  pl.BlockSpec((row_tile, 1), lambda i, j: (i, 0)),
                  pl.BlockSpec((row_tile, 1), lambda i, j: (i, 0))],
        out_specs=pl.BlockSpec((row_tile, lane_tile), lambda i, j: (i, j)),
        compiler_params=cparams_apply,
        cost_estimate=pl.CostEstimate(
            flops=int(2 * NR * HW),
            transcendentals=0,
            bytes_accessed=int(2 * NR * HW * itemsize)),
    )(x2d, scale_rows, shift_rows)

    y = y2d.reshape(N, C, H, W)
    return y, new_rm, new_rv


# ---------------------------------------------------------------------------
# reference + test
# ---------------------------------------------------------------------------
def _reference(x, gamma, beta, rm, rv, eps=1e-5, momentum=0.1):
    xf = x.astype(jnp.float32)
    mean = xf.mean(axis=(0, 2, 3), keepdims=True)
    var = xf.var(axis=(0, 2, 3), keepdims=True, ddof=1)   # torch.var default: unbiased
    y = (xf - mean) / jnp.sqrt(var + eps)
    y = y * gamma.reshape(1, -1, 1, 1) + beta.reshape(1, -1, 1, 1)
    new_rm = (1 - momentum) * rm + momentum * mean.squeeze()
    new_rv = (1 - momentum) * rv + momentum * var.squeeze()
    return y.astype(x.dtype), new_rm, new_rv


if __name__ == "__main__":
    key = jax.random.PRNGKey(0)
    N, C, H, W = 2, 4, 16, 16
    x = jax.random.normal(key, (N, C, H, W), dtype=jnp.float32)

    # deterministic parameter init (matches the module __init__)
    gamma = jnp.ones((C,), jnp.float32)
    beta = jnp.zeros((C,), jnp.float32)
    running_mean = jnp.zeros((C,), jnp.float32)
    running_var = jnp.ones((C,), jnp.float32)

    bn = jax.jit(batch_norm_forward)
    y, new_rm, new_rv = bn(x, gamma, beta, running_mean, running_var)
    jax.block_until_ready((y, new_rm, new_rv))

    y_ref, rm_ref, rv_ref = _reference(x, gamma, beta, running_mean, running_var)
    assert jnp.allclose(y, y_ref, atol=1e-4, rtol=1e-4), \
        float(jnp.max(jnp.abs(y - y_ref)))
    assert jnp.allclose(new_rm, rm_ref, atol=1e-5)
    assert jnp.allclose(new_rv, rv_ref, atol=1e-5)

    print("KERNEL_OK")
</pallas_src>

<mosaic_0001>
module attributes {stable_mosaic.version = 11 : i64} {
  func.func @_bn_stats_kernel(%arg0: i32, %arg1: i32, %arg2: memref<8x256xf32, #tpu.memory_space<vmem>>, %arg3: memref<8x1xf32, #tpu.memory_space<vmem>>, %arg4: memref<8x1xf32, #tpu.memory_space<vmem>>) attributes {dimension_semantics = [#tpu.dimension_semantics<parallel>, #tpu.dimension_semantics<arbitrary>], iteration_bounds = array<i64: 1, 1>, scalar_prefetch = 0 : i64, scratch_operands = 0 : i64, tpu.core_type = #tpu.core_type<tc>, window_params = [{transform_indices = @transform_0, window_bounds = array<i64: 8, 256>}, {transform_indices = @transform_1, window_bounds = array<i64: 8, 1>}, {transform_indices = @transform_2, window_bounds = array<i64: 8, 1>}]} {
    %c0_i32 = arith.constant 0 : i32
    %0 = arith.cmpi eq, %arg1, %c0_i32 : i32
    %1 = arith.extui %0 : i1 to i32
    %c0_i32_0 = arith.constant 0 : i32
    %2 = arith.cmpi ne, %1, %c0_i32_0 : i32
    scf.if %2 {
      %cst_11 = arith.constant 0.000000e+00 : f32
      %15 = vector.broadcast %cst_11 : f32 to vector<8x1xf32>
      %c0_12 = arith.constant 0 : index
      %c0_13 = arith.constant 0 : index
      %16 = vector.load %arg3[%c0_12, %c0_13] : memref<8x1xf32, #tpu.memory_space<vmem>>, vector<8x1xf32>
      tpu.vector_store %arg3[%c0_12, %c0_13], %15 {strides = array<i32>} : memref<8x1xf32, #tpu.memory_space<vmem>>, vector<8x1xf32>,
      %cst_14 = arith.constant 0.000000e+00 : f32
      %17 = vector.broadcast %cst_14 : f32 to vector<8x1xf32>
      %c0_15 = arith.constant 0 : index
      %c0_16 = arith.constant 0 : index
      %18 = vector.load %arg4[%c0_15, %c0_16] : memref<8x1xf32, #tpu.memory_space<vmem>>, vector<8x1xf32>
      tpu.vector_store %arg4[%c0_15, %c0_16], %17 {strides = array<i32>} : memref<8x1xf32, #tpu.memory_space<vmem>>, vector<8x1xf32>,
    } else {
    }
    %c0 = arith.constant 0 : index
    %c0_1 = arith.constant 0 : index
    %3 = vector.load %arg2[%c0, %c0_1] : memref<8x256xf32, #tpu.memory_space<vmem>>, vector<8x256xf32>
    %c0_2 = arith.constant 0 : index
    %c0_3 = arith.constant 0 : index
    %4 = vector.load %arg3[%c0_2, %c0_3] : memref<8x1xf32, #tpu.memory_space<vmem>>, vector<8x1xf32>
    %cst = arith.constant dense<0.000000e+00> : vector<8xf32>
    %5 = vector.multi_reduction <add>, %3, %cst [1] : vector<8x256xf32> to vector<8xf32>
    %6 = vector.shape_cast %5 : vector<8xf32> to vector<8x1xf32>
    %7 = arith.addf %4, %6 : vector<8x1xf32>
    %c0_4 = arith.constant 0 : index
    %c0_5 = arith.constant 0 : index
    %8 = vector.load %arg3[%c0_4, %c0_5] : memref<8x1xf32, #tpu.memory_space<vmem>>, vector<8x1xf32>
    tpu.vector_store %arg3[%c0_4, %c0_5], %7 {strides = array<i32>} : memref<8x1xf32, #tpu.memory_space<vmem>>, vector<8x1xf32>,
    %c0_6 = arith.constant 0 : index
    %c0_7 = arith.constant 0 : index
    %9 = vector.load %arg4[%c0_6, %c0_7] : memref<8x1xf32, #tpu.memory_space<vmem>>, vector<8x1xf32>
    %10 = arith.mulf %3, %3 : vector<8x256xf32>
    %cst_8 = arith.constant dense<0.000000e+00> : vector<8xf32>
    %11 = vector.multi_reduction <add>, %10, %cst_8 [1] : vector<8x256xf32> to vector<8xf32>
    %12 = vector.shape_cast %11 : vector<8xf32> to vector<8x1xf32>
    %13 = arith.addf %9, %12 : vector<8x1xf32>
    %c0_9 = arith.constant 0 : index
    %c0_10 = arith.constant 0 : index
    %14 = vector.load %arg4[%c0_9, %c0_10] : memref<8x1xf32, #tpu.memory_space<vmem>>, vector<8x1xf32>
    tpu.vector_store %arg4[%c0_9, %c0_10], %13 {strides = array<i32>} : memref<8x1xf32, #tpu.memory_space<vmem>>, vector<8x1xf32>,
    return
  }
  func.func @transform_0(%arg0: i32, %arg1: i32) -> (i32, i32) {
    %c0_i32 = arith.constant 0 : i32
    return %arg0, %arg1 : i32, i32
  }
  func.func @transform_1(%arg0: i32, %arg1: i32) -> (i32, i32) {
    %c0_i32 = arith.constant 0 : i32
    %c0_i32_0 = arith.constant 0 : i32
    return %arg0, %c0_i32 : i32, i32
  }
  func.func @transform_2(%arg0: i32, %arg1: i32) -> (i32, i32) {
    %c0_i32 = arith.constant 0 : i32
    %c0_i32_0 = arith.constant 0 : i32
    return %arg0, %c0_i32 : i32, i32
  }
}

module attributes {stable_mosaic.version = 11 : i64} {
  func.func @_bn_apply_kernel(%arg0: i32, %arg1: i32, %arg2: memref<8x256xf32, #tpu.memory_space<vmem>>, %arg3: memref<8x1xf32, #tpu.memory_space<vmem>>, %arg4: memref<8x1xf32, #tpu.memory_space<vmem>>, %arg5: memref<8x256xf32, #tpu.memory_space<vmem>>) attributes {dimension_semantics = [#tpu.dimension_semantics<parallel>, #tpu.dimension_semantics<parallel>], iteration_bounds = array<i64: 1, 1>, scalar_prefetch = 0 : i64, scratch_operands = 0 : i64, tpu.core_type = #tpu.core_type<tc>, window_params = [{transform_indices = @transform_0, window_bounds = array<i64: 8, 256>}, {transform_indices = @transform_1, window_bounds = array<i64: 8, 1>}, {transform_indices = @transform_2, window_bounds = array<i64: 8, 1>}, {transform_indices = @transform_3, window_bounds = array<i64: 8, 256>}]} {
    %c0 = arith.constant 0 : index
    %c0_0 = arith.constant 0 : index
    %0 = vector.load %arg2[%c0, %c0_0] : memref<8x256xf32, #tpu.memory_space<vmem>>, vector<8x256xf32>
    %c0_1 = arith.constant 0 : index
    %c0_2 = arith.constant 0 : index
    %1 = vector.load %arg3[%c0_1, %c0_2] : memref<8x1xf32, #tpu.memory_space<vmem>>, vector<8x1xf32>
    %2 = vector.broadcast %1 : vector<8x1xf32> to vector<8x256xf32>
    %3 = arith.mulf %0, %2 : vector<8x256xf32>
    %c0_3 = arith.constant 0 : index
    %c0_4 = arith.constant 0 : index
    %4 = vector.load %arg4[%c0_3, %c0_4] : memref<8x1xf32, #tpu.memory_space<vmem>>, vector<8x1xf32>
    %5 = vector.broadcast %4 : vector<8x1xf32> to vector<8x256xf32>
    %6 = arith.addf %3, %5 : vector<8x256xf32>
    %c0_5 = arith.constant 0 : index
    %c0_6 = arith.constant 0 : index
    %7 = vector.load %arg5[%c0_5, %c0_6] : memref<8x256xf32, #tpu.memory_space<vmem>>, vector<8x256xf32>
    tpu.vector_store %arg5[%c0_5, %c0_6], %6 {strides = array<i32>} : memref<8x256xf32, #tpu.memory_space<vmem>>, vector<8x256xf32>,
    return
  }
  func.func @transform_0(%arg0: i32, %arg1: i32) -> (i32, i32) {
    %c0_i32 = arith.constant 0 : i32
    return %arg0, %arg1 : i32, i32
  }
  func.func @transform_1(%arg0: i32, %arg1: i32) -> (i32, i32) {
    %c0_i32 = arith.constant 0 : i32
    %c0_i32_0 = arith.constant 0 : i32
    return %arg0, %c0_i32 : i32, i32
  }
  func.func @transform_2(%arg0: i32, %arg1: i32) -> (i32, i32) {
    %c0_i32 = arith.constant 0 : i32
    %c0_i32_0 = arith.constant 0 : i32
    return %arg0, %c0_i32 : i32, i32
  }
  func.func @transform_3(%arg0: i32, %arg1: i32) -> (i32, i32) {
    %c0_i32 = arith.constant 0 : i32
    return %arg0, %arg1 : i32, i32
  }
}

</mosaic_0001>

<llo_original>
// kernel: batch_norm_forward.2
$region0: #{batch_norm_forward.2}
  #allocation0 [shape = 'u32[]', space=smem, size = 0x4, offset = 0x4, fixed_abs, tag = 'smem constant byte address 0x4 - core index']
  #allocation1 [shape = 'u32[144,128]{1,0:T(1,128)}', space=vmem, size = 0x12000, scoped, tag = 'internal scratch']
  %s0 = inlined_call_operand.vmem [shape: f32[8,256], index: 0, kind: input, shape index: {}]
  %s1 = inlined_call_operand.vmem [shape: f32[8,1], index: 1, kind: output, shape index: {0}]
  %s2 = inlined_call_operand.vmem [shape: f32[8,1], index: 2, kind: output, shape index: {1}]
  %3 = xla_tuple %s1, %s2
  %s4 = sld [smem:[#allocation0]]
  $region26: #{batch_norm_forward.2} parent=0
    _
  %s6 = ssub.s32 1, %s4
  %s7 = scalar_select 0, %s6, %s4
  // Predicated region
  $region2: #{batch_norm_forward.2} parent=0 // pred_check
    _
  $region3: #{batch_norm_forward.2} parent=0 // pred_check_branch
    %9 = sbr.rel (0) target = $region5
  $region4: #{batch_norm_forward.2} parent=0 // pred_region
    _
  $region5: #{batch_norm_forward.2} parent=0 // pred_fallthru
    _
  %p10 = scmp.eq.s32.totalorder 0, 0
  // Predicated region
  $region6: #{batch_norm_forward.2} parent=0 // pred_check
    %p11 = pneg %p10
  $region7: #{batch_norm_forward.2} parent=0 // pred_check_branch
    %13 = sbr.rel (%p11) target = $region9
  $region8: #{batch_norm_forward.2} parent=0 // pred_region
    %vm14 = vcmask 7168
    %15 = vst.msk [vmem:[%s1] sm:$0xff] %vm14, 0.0
    %16 = vst.msk [vmem:[%s2] sm:$0xff] %vm14, 0.0
  $region9: #{batch_norm_forward.2} parent=0 // pred_fallthru
    _
  %v17 = vld [vmem:[%s0] sm:$0xff]
  %v18 = vld [vmem:[%s0 + $0x8] sm:$0xff]
  %v19 = vld [vmem:[%s1] sm:$0xff]
  %v20 = vadd.f32 %v17, %v18
  %21 = vadd.xlane.f32.xlu0 %v20
  %v22 = vpop.xlane.xlu0 %21
  %v23 = vadd.f32 %v19, %v22
  %vm24 = vcmask 7168
  %25 = vst.msk [vmem:[%s1] sm:$0xff] %vm24, %v23
  %v26 = vld [vmem:[%s2] sm:$0xff]
  %v27 = vmul.f32 %v17, %v17
  %v28 = vmul.f32 %v18, %v18
  %v29 = vadd.f32 %v27, %v28
  %30 = vadd.xlane.f32.xlu0 %v29
  %v31 = vpop.xlane.xlu0 %30
  %v32 = vadd.f32 %v26, %v31
  %33 = vst.msk [vmem:[%s2] sm:$0xff] %vm24, %v32
  // Predicated region
  $region10: #{batch_norm_forward.2} parent=0 // pred_check
    _
  $region11: #{batch_norm_forward.2} parent=0 // pred_check_branch
    %35 = sbr.rel (0) target = $region13
  $region12: #{batch_norm_forward.2} parent=0 // pred_region
    _
  $region13: #{batch_norm_forward.2} parent=0 // pred_fallthru
    _
  // Predicated region
  $region14: #{batch_norm_forward.2} parent=0 // pred_check
    _
  $region15: #{batch_norm_forward.2} parent=0 // pred_check_branch
    %37 = sbr.rel (0) target = $region17
  $region16: #{batch_norm_forward.2} parent=0 // pred_region
    _
  $region17: #{batch_norm_forward.2} parent=0 // pred_fallthru
    _
  // Predicated region
  $region18: #{batch_norm_forward.2} parent=0 // pred_check
    _
  $region19: #{batch_norm_forward.2} parent=0 // pred_check_branch
    %39 = sbr.rel (0) target = $region21
  $region20: #{batch_norm_forward.2} parent=0 // pred_region
    _
  $region21: #{batch_norm_forward.2} parent=0 // pred_fallthru
    _
  // Predicated region
  $region22: #{batch_norm_forward.2} parent=0 // pred_check
    _
  $region23: #{batch_norm_forward.2} parent=0 // pred_check_branch
    %41 = sbr.rel (0) target = $region25
  $region24: #{batch_norm_forward.2} parent=0 // pred_region
    _
  $region25: #{batch_norm_forward.2} parent=0 // pred_fallthru
    _

// kernel: batch_norm_forward.3
$region0: #{batch_norm_forward.3}
  #allocation0 [shape = 'u32[]', space=smem, size = 0x4, offset = 0x4, fixed_abs, tag = 'smem constant byte address 0x4 - core index']
  #allocation1 [shape = 'u32[144,128]{1,0:T(1,128)}', space=vmem, size = 0x12000, scoped, tag = 'internal scratch']
  %s0 = inlined_call_operand.vmem [shape: f32[8,256], index: 0, kind: input, shape index: {}]
  %s1 = inlined_call_operand.vmem [shape: f32[8,1], index: 1, kind: input, shape index: {}]
  %s2 = inlined_call_operand.vmem [shape: f32[8,1], index: 2, kind: input, shape index: {}]
  %s3 = inlined_call_operand.vmem [shape: f32[8,256], index: 3, kind: output, shape index: {}]
  %s4 = sld [smem:[#allocation0]]
  $region22: #{batch_norm_forward.3} parent=0
    _
  %s6 = ssub.s32 1, %s4
  %s7 = scalar_select 0, %s6, %s4
  // Predicated region
  $region2: #{batch_norm_forward.3} parent=0 // pred_check
    _
  $region3: #{batch_norm_forward.3} parent=0 // pred_check_branch
    %9 = sbr.rel (0) target = $region5
  $region4: #{batch_norm_forward.3} parent=0 // pred_region
    _
  $region5: #{batch_norm_forward.3} parent=0 // pred_fallthru
    _
  // Predicated region
  $region6: #{batch_norm_forward.3} parent=0 // pred_check
    _
  $region7: #{batch_norm_forward.3} parent=0 // pred_check_branch
    %11 = sbr.rel (0) target = $region9
  $region8: #{batch_norm_forward.3} parent=0 // pred_region
    _
  $region9: #{batch_norm_forward.3} parent=0 // pred_fallthru
    _
  // Predicated region
  $region10: #{batch_norm_forward.3} parent=0 // pred_check
    _
  $region11: #{batch_norm_forward.3} parent=0 // pred_check_branch
    %13 = sbr.rel (0) target = $region13
  $region12: #{batch_norm_forward.3} parent=0 // pred_region
    _
  $region13: #{batch_norm_forward.3} parent=0 // pred_fallthru
    _
  %v14 = vld [vmem:[%s0] sm:$0xff]
  %v15 = vld [vmem:[%s0 + $0x8] sm:$0xff]
  %v16 = vld [vmem:[%s1] sm:$0xff]
  %18 = vset.pattern.permute.xlu0 0
  %19 = vperm.xlu0 %18, %v16
  %v20 = vpop.permute.xlu0 %19
  %v22 = vmul.f32 %v14, %v20
  %v23 = vmul.f32 %v15, %v20
  %v24 = vld [vmem:[%s2] sm:$0xff]
  %26 = vset.pattern.permute.xlu0 0
  %27 = vperm.xlu0 %26, %v24
  %v28 = vpop.permute.xlu0 %27
  %v30 = vadd.f32 %v22, %v28
  %v31 = vadd.f32 %v23, %v28
  %32 = vst [vmem:[%s3] sm:$0xff] %v30
  %33 = vst [vmem:[%s3 + $0x8] sm:$0xff] %v31
  // Predicated region
  $region14: #{batch_norm_forward.3} parent=0 // pred_check
    _
  $region15: #{batch_norm_forward.3} parent=0 // pred_check_branch
    %35 = sbr.rel (0) target = $region17
  $region16: #{batch_norm_forward.3} parent=0 // pred_region
    _
  $region17: #{batch_norm_forward.3} parent=0 // pred_fallthru
    _
  // Predicated region
  $region18: #{batch_norm_forward.3} parent=0 // pred_check
    _
  $region19: #{batch_norm_forward.3} parent=0 // pred_check_branch
    %37 = sbr.rel (0) target = $region21
  $region20: #{batch_norm_forward.3} parent=0 // pred_region
    _
  $region21: #{batch_norm_forward.3} parent=0 // pred_fallthru
    _

</llo_original>
